<compile_context>
chip_gen: v6e
topology: v6e:2x2x1
jax: 0.10.0
libtpu: 0.0.40
codegen_flags: <defaults>
</compile_context>

<pallas_src>
import functools

import jax
import jax.numpy as jnp
from jax.experimental import pallas as pl
from jax.experimental.pallas import tpu as pltpu

LANES = 128
SUBLANES = 8
MAX_TILE_BYTES = 4 * 1024 * 1024  # ~4 MiB per input block


def _tensorcores_per_device():
    """2 when one Pallas device spans two TensorCores (v4/v5p megacore, v7x)."""
    try:
        kind = jax.devices()[0].device_kind.lower().replace(" ", "")
    except Exception:
        return 1
    if any(s in kind for s in ("lite", "v5e", "v6e", "v2", "v3")):
        return 1
    if any(s in kind for s in ("v4", "v5p", "7")):
        return 2
    return 1


def _vmem_budget_bytes():
    """Generation-aware cap: ~3/4 of physical VMEM, never above 96 MiB."""
    try:
        cap = int(pltpu.get_tpu_info().vmem_capacity_bytes)
    except Exception:
        cap = 128 << 20
    return min(96 << 20, (cap * 3) // 4)


def _msle_kernel(pred_ref, true_ref, out_ref, *, rows, tile_rows,
                 tiles_per_core, acc_rows):
    c = pl.program_id(0)   # TensorCore axis (size 1 or 2)
    i = pl.program_id(1)   # sequential reduction axis

    @pl.when(i == 0)
    def _():
        out_ref[...] = jnp.zeros_like(out_ref)

    # Global row offset of this tile, UNclamped so out-of-range / duplicated
    # tail tiles are detected and fully masked.
    row_start = (c * tiles_per_core + i) * tile_rows

    p = pred_ref[...].astype(jnp.float32)
    t = true_ref[...].astype(jnp.float32)
    # log(p+1) - log(t+1) == log1p((p - t) / (t + 1)): one EUP push / element.
    d = jnp.log1p((p - t) / (t + 1.0))
    sq = d * d

    def _accumulate(vals):
        if acc_rows == SUBLANES:
            part = jnp.sum(vals.reshape(tile_rows // SUBLANES, SUBLANES, LANES),
                           axis=0)
        else:
            part = jnp.sum(vals, axis=0, keepdims=True)
        out_ref[...] += part.reshape(out_ref.shape)

    is_full = row_start + tile_rows <= rows

    # Fast path: interior tiles skip the per-element mask entirely.
    @pl.when(is_full)
    def _():
        _accumulate(sq)

    # Tail / duplicate tiles: single select on sq AFTER the math (select stops
    # NaN/Inf from garbage rows of the padded boundary block from propagating).
    @pl.when(jnp.logical_not(is_full))
    def _():
        rid = jax.lax.broadcasted_iota(jnp.int32, (tile_rows, 1), 0) + row_start
        _accumulate(jnp.where(rid < rows, sq, 0.0))


def msle_loss(pred, true):
    """mean((log(pred+1) - log(true+1))**2) over all elements, matching
    nn.MSELoss()(log(pred+1), log(true+1)).  Inputs must be > -1 elementwise."""
    assert pred.shape == true.shape
    n = pred.size

    pf = jnp.ravel(pred)  # keep original dtype; f32 upcast happens in-kernel
    tf = jnp.ravel(true)

    # Lane-unaligned remainder (< 128 elements) summed in plain JAX instead of
    # a full-array jnp.pad copy.  The demo / common case (n % 128 == 0) stays
    # zero-copy into the kernel.
    rem = n % LANES
    if rem:
        tp = pf[n - rem:].astype(jnp.float32)
        tt = tf[n - rem:].astype(jnp.float32)
        tail_sum = jnp.sum(jnp.square(jnp.log1p((tp - tt) / (tt + 1.0))))
        pf = pf[:n - rem]
        tf = tf[:n - rem]
    else:
        tail_sum = jnp.float32(0.0)

    rows = (n - rem) // LANES
    if rows == 0:
        return (tail_sum / n).astype(jnp.float32)

    pf = pf.reshape(rows, LANES)
    tf = tf.reshape(rows, LANES)

    itemsize = pf.dtype.itemsize
    # Byte-based tile sizing: ~4 MiB per input block regardless of dtype.
    max_tile_rows = max(
        SUBLANES, (MAX_TILE_BYTES // (LANES * itemsize)) // SUBLANES * SUBLANES)

    n_cores = _tensorcores_per_device()
    if n_cores > 1 and rows < SUBLANES * n_cores:
        n_cores = 1  # too small to split across cores

    if n_cores == 1:
        tile_rows = rows if rows <= max_tile_rows else max_tile_rows
    else:
        per_core = pl.cdiv(rows, n_cores)
        tile_rows = min(max_tile_rows, SUBLANES * pl.cdiv(per_core, SUBLANES))

    total_tiles = pl.cdiv(rows, tile_rows)
    tiles_per_core = pl.cdiv(total_tiles, n_cores)
    acc_rows = SUBLANES if tile_rows % SUBLANES == 0 else 1

    def in_map(c, i):
        # Clamp so a possible extra step on the last core re-reads a valid
        # tile; its contribution is masked to zero inside the kernel.
        return (jnp.minimum(c * tiles_per_core + i, total_tiles - 1), 0)

    kernel = functools.partial(
        _msle_kernel, rows=rows, tile_rows=tile_rows,
        tiles_per_core=tiles_per_core, acc_rows=acc_rows)

    in_block_bytes = tile_rows * LANES * itemsize
    f32_block_bytes = tile_rows * LANES * 4
    # 2 inputs x 2 pipeline buffers + headroom that scales with tile size
    # (covers tile-sized f32 temporaries if the compiler materializes them).
    needed = 4 * in_block_bytes + 3 * f32_block_bytes + (2 << 20)
    vmem_limit = int(min(_vmem_budget_bytes(), max(32 << 20, needed)))

    def run(dim_sems):
        return pl.pallas_call(
            kernel,
            out_shape=jax.ShapeDtypeStruct((n_cores, acc_rows, LANES),
                                           jnp.float32),
            grid_spec=pltpu.PrefetchScalarGridSpec(
                num_scalar_prefetch=0,
                grid=(n_cores, tiles_per_core),
                in_specs=[
                    pl.BlockSpec((tile_rows, LANES), in_map),
                    pl.BlockSpec((tile_rows, LANES), in_map),
                ],
                out_specs=pl.BlockSpec((1, acc_rows, LANES),
                                       lambda c, i: (c, 0, 0)),
            ),
            compiler_params=pltpu.CompilerParams(
                dimension_semantics=dim_sems,
                vmem_limit_bytes=vmem_limit,
            ),
        )(pf, tf)

    if n_cores == 2:
        # Real per-core split on v7x / megacore chips; fall back to plain
        # "parallel" semantics if the backend rejects CORE_PARALLEL here.
        try:
            partials = run((pltpu.CORE_PARALLEL, pltpu.ARBITRARY))
        except Exception:
            partials = run(("parallel", "arbitrary"))
    else:
        partials = run(("arbitrary", "arbitrary"))

    # Final cross-lane/core reduce on a tiny array, then the mean.
    return ((jnp.sum(partials) + tail_sum) / n).astype(jnp.float32)


if __name__ == "__main__":
    key = jax.random.PRNGKey(0)
    k1, k2 = jax.random.split(key)
    # Small NCHW-like shapes; values kept positive so log(x+1) is well-defined.
    pred = jax.random.uniform(k1, (2, 4, 16, 16), jnp.float32, 0.0, 5.0)
    true = jax.random.uniform(k2, (2, 4, 16, 16), jnp.float32, 0.0, 5.0)

    out = msle_loss(pred, true)
    jax.block_until_ready(out)

    # Reference check in plain JAX.
    ref = jnp.mean((jnp.log(pred + 1.0) - jnp.log(true + 1.0)) ** 2)
    assert jnp.allclose(out, ref, rtol=1e-5, atol=1e-6), (out, ref)

    print("KERNEL_OK")
</pallas_src>

<mosaic_0001>
module attributes {stable_mosaic.version = 11 : i64} {
  func.func @_msle_kernel(%arg0: i32, %arg1: i32, %arg2: memref<16x128xf32, #tpu.memory_space<vmem>>, %arg3: memref<16x128xf32, #tpu.memory_space<vmem>>, %arg4: memref<1x8x128xf32, #tpu.memory_space<vmem>>) attributes {dimension_semantics = [#tpu.dimension_semantics<arbitrary>, #tpu.dimension_semantics<arbitrary>], iteration_bounds = array<i64: 1, 1>, scalar_prefetch = 0 : i64, scratch_operands = 0 : i64, tpu.core_type = #tpu.core_type<tc>, window_params = [{transform_indices = @transform_0, window_bounds = array<i64: 16, 128>}, {transform_indices = @transform_1, window_bounds = array<i64: 16, 128>}, {transform_indices = @transform_2, window_bounds = array<i64: 1, 8, 128>}]} {
    %c0_i32 = arith.constant 0 : i32
    %0 = arith.cmpi eq, %arg1, %c0_i32 : i32
    %1 = arith.extui %0 : i1 to i32
    %c0_i32_0 = arith.constant 0 : i32
    %2 = arith.cmpi ne, %1, %c0_i32_0 : i32
    scf.if %2 {
      %cst_8 = arith.constant 0.000000e+00 : f32
      %21 = vector.broadcast %cst_8 : f32 to vector<1x8x128xf32>
      %c0_9 = arith.constant 0 : index
      %c0_10 = arith.constant 0 : index
      %c0_11 = arith.constant 0 : index
      %22 = vector.load %arg4[%c0_9, %c0_10, %c0_11] : memref<1x8x128xf32, #tpu.memory_space<vmem>>, vector<1x8x128xf32>
      tpu.vector_store %arg4[%c0_9, %c0_10, %c0_11], %21 {strides = array<i32>} : memref<1x8x128xf32, #tpu.memory_space<vmem>>, vector<1x8x128xf32>,
    } else {
    }
    %c1_i32 = arith.constant 1 : i32
    %3 = arith.muli %arg0, %c1_i32 : i32
    %4 = arith.addi %3, %arg1 : i32
    %c16_i32 = arith.constant 16 : i32
    %5 = arith.muli %4, %c16_i32 : i32
    %c0 = arith.constant 0 : index
    %c0_1 = arith.constant 0 : index
    %6 = vector.load %arg2[%c0, %c0_1] : memref<16x128xf32, #tpu.memory_space<vmem>>, vector<16x128xf32>
    %c0_2 = arith.constant 0 : index
    %c0_3 = arith.constant 0 : index
    %7 = vector.load %arg3[%c0_2, %c0_3] : memref<16x128xf32, #tpu.memory_space<vmem>>, vector<16x128xf32>
    %8 = arith.subf %6, %7 : vector<16x128xf32>
    %cst = arith.constant 1.000000e+00 : f32
    %9 = vector.broadcast %cst : f32 to vector<16x128xf32>
    %10 = arith.addf %7, %9 : vector<16x128xf32>
    %11 = arith.divf %8, %10 : vector<16x128xf32>
    %12 = math.log1p %11 : vector<16x128xf32>
    %13 = arith.mulf %12, %12 : vector<16x128xf32>
    %c16_i32_4 = arith.constant 16 : i32
    %14 = arith.addi %5, %c16_i32_4 : i32
    %c16_i32_5 = arith.constant 16 : i32
    %15 = arith.cmpi sle, %14, %c16_i32_5 : i32
    %16 = arith.extui %15 : i1 to i32
    %c0_i32_6 = arith.constant 0 : i32
    %17 = arith.cmpi ne, %16, %c0_i32_6 : i32
    scf.if %17 {
      %21 = vector.shape_cast %13 : vector<16x128xf32> to vector<2x8x128xf32>
      %cst_8 = arith.constant dense<0.000000e+00> : vector<8x128xf32>
      %22 = vector.multi_reduction <add>, %21, %cst_8 [0] : vector<2x8x128xf32> to vector<8x128xf32>
      %c0_9 = arith.constant 0 : index
      %c0_10 = arith.constant 0 : index
      %c0_11 = arith.constant 0 : index
      %23 = vector.load %arg4[%c0_9, %c0_10, %c0_11] : memref<1x8x128xf32, #tpu.memory_space<vmem>>, vector<1x8x128xf32>
      %24 = vector.shape_cast %22 : vector<8x128xf32> to vector<1x8x128xf32>
      %25 = arith.addf %23, %24 : vector<1x8x128xf32>
      %c0_12 = arith.constant 0 : index
      %c0_13 = arith.constant 0 : index
      %c0_14 = arith.constant 0 : index
      %26 = vector.load %arg4[%c0_12, %c0_13, %c0_14] : memref<1x8x128xf32, #tpu.memory_space<vmem>>, vector<1x8x128xf32>
      tpu.vector_store %arg4[%c0_12, %c0_13, %c0_14], %25 {strides = array<i32>} : memref<1x8x128xf32, #tpu.memory_space<vmem>>, vector<1x8x128xf32>,
    } else {
    }
    %true = arith.constant true
    %18 = arith.xori %15, %true : i1
    %19 = arith.extui %18 : i1 to i32
    %c0_i32_7 = arith.constant 0 : i32
    %20 = arith.cmpi ne, %19, %c0_i32_7 : i32
    scf.if %20 {
      %21 = tpu.iota {dimensions = array<i32: 0>} : vector<16x1xi32>
      %22 = vector.broadcast %5 : i32 to vector<16x1xi32>
      %23 = arith.addi %21, %22 : vector<16x1xi32>
      %c16_i32_8 = arith.constant 16 : i32
      %24 = vector.broadcast %c16_i32_8 : i32 to vector<16x1xi32>
      %25 = arith.cmpi slt, %23, %24 : vector<16x1xi32>
      %cst_9 = arith.constant 0.000000e+00 : f32
      %26 = vector.shape_cast %25 : vector<16x1xi1> to vector<16x1xi1>
      %27 = vector.broadcast %26 : vector<16x1xi1> to vector<16x128xi1>
      %28 = vector.broadcast %cst_9 : f32 to vector<16x128xf32>
      %29 = arith.select %27, %13, %28 : vector<16x128xi1>, vector<16x128xf32>
      %30 = vector.shape_cast %29 : vector<16x128xf32> to vector<2x8x128xf32>
      %cst_10 = arith.constant dense<0.000000e+00> : vector<8x128xf32>
      %31 = vector.multi_reduction <add>, %30, %cst_10 [0] : vector<2x8x128xf32> to vector<8x128xf32>
      %c0_11 = arith.constant 0 : index
      %c0_12 = arith.constant 0 : index
      %c0_13 = arith.constant 0 : index
      %32 = vector.load %arg4[%c0_11, %c0_12, %c0_13] : memref<1x8x128xf32, #tpu.memory_space<vmem>>, vector<1x8x128xf32>
      %33 = vector.shape_cast %31 : vector<8x128xf32> to vector<1x8x128xf32>
      %34 = arith.addf %32, %33 : vector<1x8x128xf32>
      %c0_14 = arith.constant 0 : index
      %c0_15 = arith.constant 0 : index
      %c0_16 = arith.constant 0 : index
      %35 = vector.load %arg4[%c0_14, %c0_15, %c0_16] : memref<1x8x128xf32, #tpu.memory_space<vmem>>, vector<1x8x128xf32>
      tpu.vector_store %arg4[%c0_14, %c0_15, %c0_16], %34 {strides = array<i32>} : memref<1x8x128xf32, #tpu.memory_space<vmem>>, vector<1x8x128xf32>,
    } else {
    }
    return
  }
  func.func @transform_0(%arg0: i32, %arg1: i32) -> (i32, i32) {
    %c1_i32 = arith.constant 1 : i32
    %0 = arith.muli %arg0, %c1_i32 : i32
    %1 = arith.addi %0, %arg1 : i32
    %c0_i32 = arith.constant 0 : i32
    %2 = arith.minsi %1, %c0_i32 : i32
    %c0_i32_0 = arith.constant 0 : i32
    %c0_i32_1 = arith.constant 0 : i32
    return %2, %c0_i32_0 : i32, i32
  }
  func.func @transform_1(%arg0: i32, %arg1: i32) -> (i32, i32) {
    %c1_i32 = arith.constant 1 : i32
    %0 = arith.muli %arg0, %c1_i32 : i32
    %1 = arith.addi %0, %arg1 : i32
    %c0_i32 = arith.constant 0 : i32
    %2 = arith.minsi %1, %c0_i32 : i32
    %c0_i32_0 = arith.constant 0 : i32
    %c0_i32_1 = arith.constant 0 : i32
    return %2, %c0_i32_0 : i32, i32
  }
  func.func @transform_2(%arg0: i32, %arg1: i32) -> (i32, i32, i32) {
    %c0_i32 = arith.constant 0 : i32
    %c0_i32_0 = arith.constant 0 : i32
    %c0_i32_1 = arith.constant 0 : i32
    return %arg0, %c0_i32, %c0_i32_0 : i32, i32, i32
  }
}

</mosaic_0001>

<llo_original>
// kernel: tpu_custom_call.1
$region0: #{tpu_custom_call.1}
  #allocation0 [shape = 'u32[]', space=smem, size = 0x4, offset = 0x4, fixed_abs, tag = 'smem constant byte address 0x4 - core index']
  #allocation1 [shape = 'u32[144,128]{1,0:T(1,128)}', space=vmem, size = 0x12000, scoped, tag = 'internal scratch']
  %s0 = inlined_call_operand.hbm [shape: f32[16,128], index: 0, kind: input, shape index: {}]
  %s1 = inlined_call_operand.hbm [shape: f32[16,128], index: 1, kind: input, shape index: {}]
  %s2 = inlined_call_operand.hbm [shape: f32[1,8,128], index: 2, kind: output, shape index: {}]
  %s3 = sld [smem:[#allocation0]]
  $region38: #{tpu_custom_call.1} parent=0
    _
  %s5 = ssub.s32 1, %s3
  %s6 = scalar_select 0, %s5, %s3
  $region1: #{tpu_custom_call.1} parent=0
    #allocation2 [shape = 'u8[8192]{0}', space=vmem, size = 0x2000, scoped, tag = 'input window, operand 0, single buffered']
    #allocation3 [shape = 's32[1]{0}', space=sflag, size = 0x4, scoped, tag = 'scoped memory for tpu_custom_call.1']
    #allocation4 [shape = 's32[1]{0}', space=sflag, size = 0x4, scoped, tag = 'scoped memory for tpu_custom_call.1']
    #allocation5 [shape = 'u8[8192]{0}', space=vmem, size = 0x2000, scoped, tag = 'input window, operand 1, single buffered']
    #allocation6 [shape = 's32[1]{0}', space=sflag, size = 0x4, scoped, tag = 'scoped memory for tpu_custom_call.1']
    #allocation7 [shape = 'u8[4096]{0}', space=vmem, size = 0x1000, scoped, tag = 'output window, operand 0, single buffered']
    %7 = vsyncpa [#allocation3], 0
    %8 = vsyncpa [#allocation6], 0
    %9 = vsyncpa [#allocation4], 0
    // Predicated region
    $region2: #{tpu_custom_call.1} parent=1 // pred_check
      _
    $region3: #{tpu_custom_call.1} parent=1 // pred_check_branch
      %11 = sbr.rel (0) target = $region5
    $region4: #{tpu_custom_call.1} parent=1 // pred_region
      %s12 = sadd.s32 0, 0
      %p13 = scmp.lt.s32.totalorder %s12, 0
      %s14 = scalar_select %p13, %s12, 0
      %s15 = smul.u32 2, %s14
      %s17 = ssub.s32 256, 256
      %18 = vsyncadd [#allocation3], %s17
      %s19 = smul.addr %s15, 128
      %s20 = scalar_lea.hbm %s0, %s19
      %s21 = sshll.u32 [#allocation2], 4
      %s22 = int_to_ptr.vmem [resolvable:$true] %s21
      %27 = dma.hbm_to_vmem [thread:$0]  %s20, 256, %s22, [#allocation3], 128, 128, 8
    $region5: #{tpu_custom_call.1} parent=1 // pred_fallthru
      _
    // Predicated region
    $region6: #{tpu_custom_call.1} parent=1 // pred_check
      _
    $region7: #{tpu_custom_call.1} parent=1 // pred_check_branch
      %29 = sbr.rel (0) target = $region9
    $region8: #{tpu_custom_call.1} parent=1 // pred_region
      %s30 = sadd.s32 0, 0
      %p31 = scmp.lt.s32.totalorder %s30, 0
      %s32 = scalar_select %p31, %s30, 0
      %s33 = smul.u32 2, %s32
      %s35 = ssub.s32 256, 256
      %36 = vsyncadd [#allocation6], %s35
      %s37 = smul.addr %s33, 128
      %s38 = scalar_lea.hbm %s1, %s37
      %s39 = sshll.u32 [#allocation5], 4
      %s40 = int_to_ptr.vmem [resolvable:$true] %s39
      %45 = dma.hbm_to_vmem [thread:$0]  %s38, 256, %s40, [#allocation6], 128, 128, 8
    $region9: #{tpu_custom_call.1} parent=1 // pred_fallthru
      _
    // Predicated region
    $region10: #{tpu_custom_call.1} parent=1 // pred_check
      _
    $region11: #{tpu_custom_call.1} parent=1 // pred_check_branch
      %47 = sbr.rel (0) target = $region13
    $region12: #{tpu_custom_call.1} parent=1 // pred_region
      %48 = dma.done [#allocation3], 256
    $region13: #{tpu_custom_call.1} parent=1 // pred_fallthru
      _
    // Predicated region
    $region14: #{tpu_custom_call.1} parent=1 // pred_check
      _
    $region15: #{tpu_custom_call.1} parent=1 // pred_check_branch
      %50 = sbr.rel (0) target = $region17
    $region16: #{tpu_custom_call.1} parent=1 // pred_region
      %51 = dma.done [#allocation6], 256
    $region17: #{tpu_custom_call.1} parent=1 // pred_fallthru
      _
    %s52 = sadd.s32 0, 0
    %p53 = scmp.lt.s32.totalorder %s52, 0
    %s54 = scalar_select %p53, %s52, 0
    %s55 = smul.u32 2, %s54
    %s56 = sadd.s32 0, 0
    %p57 = scmp.lt.s32.totalorder %s56, 0
    %s58 = scalar_select %p57, %s56, 0
    %s59 = smul.u32 2, %s58
    %p60 = scmp.eq.s32.totalorder 0, 0
    // Predicated region
    $region18: #{tpu_custom_call.1} parent=1 // pred_check
      %p61 = pneg %p60
    $region19: #{tpu_custom_call.1} parent=1 // pred_check_branch
      %63 = sbr.rel (%p61) target = $region21
    $region20: #{tpu_custom_call.1} parent=1 // pred_region
      %64 = vst [vmem:[#allocation7] sm:$0xff] 0.0
    $region21: #{tpu_custom_call.1} parent=1 // pred_fallthru
      _
    %s65 = sadd.s32 0, 0
    %s66 = smul.u32 %s65, 16
    %v67 = vld [vmem:[#allocation2] sm:$0xff]
    %v68 = vld [vmem:[#allocation2 + $0x8] sm:$0xff]
    %v69 = vld [vmem:[#allocation5] sm:$0xff]
    %v70 = vld [vmem:[#allocation5 + $0x8] sm:$0xff]
    %v71 = vsub.f32 %v67, %v69
    %v72 = vsub.f32 %v68, %v70
    %v73 = vadd.f32 %v69, 1.0
    %v74 = vadd.f32 %v70, 1.0
    %v75 = vrcp.pop %v73
    %v76 = vmul.f32 %v71, %v75
    %v77 = vrcp.pop %v74
    %v78 = vmul.f32 %v72, %v77
    %v79 = vadd.f32 %v76, 1.0
    %v80 = vlog2.pop %v79
    %v81 = vmul.f32 %v80, 0.6931472
    %v82 = vmul.f32 -0.5, %v76
    %v83 = vadd.f32 %v82, 1.0
    %v84 = vmul.f32 %v83, %v76
    %v85 = vand.u32 2147483647, %v76
    %vm86 = vcmp.lt.f32.partialorder %v85, 0.0004427343
    %v87 = vsel %vm86, %v84, %v81
    %v88 = vadd.f32 %v78, 1.0
    %v89 = vlog2.pop %v88
    %v90 = vmul.f32 %v89, 0.6931472
    %v91 = vmul.f32 -0.5, %v78
    %v92 = vadd.f32 %v91, 1.0
    %v93 = vmul.f32 %v92, %v78
    %v94 = vand.u32 2147483647, %v78
    %vm95 = vcmp.lt.f32.partialorder %v94, 0.0004427343
    %v96 = vsel %vm95, %v93, %v90
    %v97 = vmul.f32 %v87, %v87
    %v98 = vmul.f32 %v96, %v96
    %s99 = sadd.s32 %s66, 16
    %p100 = scmp.le.s32.totalorder %s99, 16
    // Predicated region
    $region22: #{tpu_custom_call.1} parent=1 // pred_check
      %p101 = pneg %p100
    $region23: #{tpu_custom_call.1} parent=1 // pred_check_branch
      %103 = sbr.rel (%p101) target = $region25
    $region24: #{tpu_custom_call.1} parent=1 // pred_region
      %v104 = vadd.f32 %v97, %v98
      %v105 = vld [vmem:[#allocation7] sm:$0xff]
      %v106 = vadd.f32 %v105, %v104
      %107 = vst [vmem:[#allocation7] sm:$0xff] %v106
    $region25: #{tpu_custom_call.1} parent=1 // pred_fallthru
      _
    %p108 = scmp.gt.s32.totalorder %s99, 16
    // Predicated region
    $region26: #{tpu_custom_call.1} parent=1 // pred_check
      %p109 = pneg %p108
    $region27: #{tpu_custom_call.1} parent=1 // pred_check_branch
      %111 = sbr.rel (%p109) target = $region29
    $region28: #{tpu_custom_call.1} parent=1 // pred_region
      %v112 = vlaneseq
      %v113 = vshrl.u32 %v112, 7
      %v114 = vadd.s32 %v113, 8
      %v115 = vstv %s66
      %v116 = vadd.s32 %v113, %v115
      %v117 = vadd.s32 %v114, %v115
      %vm118 = vcmp.lt.s32.totalorder %v116, 16
      %vm119 = vcmp.lt.s32.totalorder %v117, 16
      %v120 = vsel %vm118, 1, 0
      %v121 = vsel %vm119, 1, 0
      %vm122 = vcmp.eq.s32.totalorder %v120, 1
      %vm123 = vcmp.eq.s32.totalorder %v121, 1
      %v124 = vsel %vm122, %v97, 0.0
      %v125 = vsel %vm123, %v98, 0.0
      %v126 = vadd.f32 %v124, %v125
      %v127 = vld [vmem:[#allocation7] sm:$0xff]
      %v128 = vadd.f32 %v127, %v126
      %129 = vst [vmem:[#allocation7] sm:$0xff] %v128
    $region29: #{tpu_custom_call.1} parent=1 // pred_fallthru
      _
    // Predicated region
    $region30: #{tpu_custom_call.1} parent=1 // pred_check
      _
    $region31: #{tpu_custom_call.1} parent=1 // pred_check_branch
      %131 = sbr.rel (0) target = $region33
    $region32: #{tpu_custom_call.1} parent=1 // pred_region
      %s133 = ssub.s32 128, 128
      %134 = vsyncadd [#allocation4], %s133
      %s136 = sshll.u32 [#allocation7], 4
      %s137 = int_to_ptr.vmem [resolvable:$true] %s136
      %139 = dma.vmem_to_hbm [thread:$0]  %s137, 128, %s2, [#allocation4]
    $region33: #{tpu_custom_call.1} parent=1 // pred_fallthru
      _
    // Predicated region
    $region34: #{tpu_custom_call.1} parent=1 // pred_check
      _
    $region35: #{tpu_custom_call.1} parent=1 // pred_check_branch
      %141 = sbr.rel (0) target = $region37
    $region36: #{tpu_custom_call.1} parent=1 // pred_region
      %142 = dma.done [#allocation4], 128
    $region37: #{tpu_custom_call.1} parent=1 // pred_fallthru
      _
    %143 = vsyncpa [#allocation3], 1
    %144 = vsyncpa [#allocation6], 1
    %145 = vsyncpa [#allocation4], 1

</llo_original>
